<compile_context>
chip_gen: v7x
topology: tpu7x:2x2x1
jax: 0.10.0
libtpu: 0.0.40
codegen_flags: <defaults>
</compile_context>

<pallas_src>
import jax
import jax.numpy as jnp
from jax.experimental import pallas as pl
from jax.experimental.pallas import tpu as pltpu


def attention_kernel(x_ref, w1_ref, b1_ref, w2_ref, b2_ref, o_ref):
    # x_ref:  (Bt, L, Din)   block of Bt batch elements
    # w1_ref: (Din, Dd), b1_ref: (1, Dd)
    # w2_ref: (Dd, H),   b2_ref: (1, H)
    # o_ref:  (Bt, H, L)
    bt, seq_len, din = x_ref.shape
    n_heads = o_ref.shape[1]

    # Fold the batch block into the matmul M dimension: one (Bt*L, Din) x
    # (Din, Dd) MXU matmul instead of Bt tiny ones.
    # NOTE: this reshape is free only because L is a multiple of the f32
    # sublane tile (8); pad L in the wrapper if that ever changes.
    x2d = x_ref[...].reshape(bt * seq_len, din)                      # (Bt*L, Din)
    h = jnp.tanh(
        jnp.dot(x2d, w1_ref[...], preferred_element_type=jnp.float32)
        + b1_ref[...]
    )                                                                # (Bt*L, Dd)
    s = (
        jnp.dot(h, w2_ref[...], preferred_element_type=jnp.float32)
        + b2_ref[...]
    )                                                                # (Bt*L, H)
    s = s.reshape(bt, seq_len, n_heads)                              # (Bt, L, H)

    # Transpose to the output layout first, then softmax over the sequence
    # axis (now the last / lane axis) — avoids a separate XLA transpose op.
    st = jnp.transpose(s, (0, 2, 1))                                 # (Bt, H, L)
    m = jnp.max(st, axis=-1, keepdims=True)                          # (Bt, H, 1)
    e = jnp.exp(st - m)                                              # (Bt, H, L)
    d = jnp.sum(e, axis=-1, keepdims=True)                           # (Bt, H, 1)
    o_ref[...] = (e / d).astype(o_ref.dtype)


def _choose_block_batch(B, L, Din, H, dtype_bytes=4):
    """Pick the batch-block size bt.

    * Small problems run as ONE grid step (serial grid on v5e/v6e; per-step
      overhead ~0.35 us dominates tiny matmuls).
    * Split into >= 2 steps (v7x megacore "parallel" axis) only when each
      step keeps >= 512 matmul rows and Din >= 128.
    * Cap bt so double-buffered input/output tiles fit comfortably in a
      budget sized for v7x's 64 MiB VMEM (weights are resident on top).
    """
    rows = max(L, 1)
    vmem_budget = 24 * 1024 * 1024
    per_batch_bytes = 2 * (L * Din + H * L) * dtype_bytes   # 2x = double-buffer
    bt_vmem = max(1, vmem_budget // max(per_batch_bytes, 1))

    bt = min(B, bt_vmem)
    half = pl.cdiv(B, 2)
    if Din >= 128 and half * rows >= 512:
        bt = min(bt, half)
    return max(1, bt)


def attention_forward(x, w1, b1, w2, b2):
    B, L, Din = x.shape
    Dd = w1.shape[1]
    H = w2.shape[1]
    itemsize = jnp.dtype(x.dtype).itemsize
    bt = _choose_block_batch(B, L, Din, H, itemsize)
    nb = pl.cdiv(B, bt)   # ragged last block is fine (per-batch independent)

    b1_2d = b1.reshape(1, Dd)
    b2_2d = b2.reshape(1, H)

    # Raise the scoped-VMEM limit only when tiles actually need it
    # (default scoped limit: 16 MiB v5e, 32 MiB v6e/v7x).
    tile_bytes = (2 * bt * L * (Din + H) + Din * Dd + Dd * H + Dd + H) * itemsize
    compiler_kwargs = dict(
        dimension_semantics=("parallel",) if nb > 1 else ("arbitrary",),
    )
    if tile_bytes > 12 * 1024 * 1024:
        compiler_kwargs["vmem_limit_bytes"] = int(
            min(2 * tile_bytes + (4 << 20), 60 * 1024 * 1024)
        )

    return pl.pallas_call(
        attention_kernel,
        out_shape=jax.ShapeDtypeStruct((B, H, L), x.dtype),
        grid_spec=pltpu.PrefetchScalarGridSpec(
            num_scalar_prefetch=0,
            grid=(nb,),
            in_specs=[
                pl.BlockSpec((bt, L, Din), lambda b: (b, 0, 0)),
                # Weights/biases: constant index maps -> VMEM-resident.
                pl.BlockSpec((Din, Dd), lambda b: (0, 0)),
                pl.BlockSpec((1, Dd), lambda b: (0, 0)),
                pl.BlockSpec((Dd, H), lambda b: (0, 0)),
                pl.BlockSpec((1, H), lambda b: (0, 0)),
            ],
            out_specs=pl.BlockSpec((bt, H, L), lambda b: (b, 0, 0)),
        ),
        compiler_params=pltpu.CompilerParams(**compiler_kwargs),
    )(x, w1, b1_2d, w2, b2_2d)


def attention_reference(x, w1, b1, w2, b2):
    h = jnp.tanh(jnp.einsum("bld,dk->blk", x, w1) + b1)               # (B, L, Dd)
    s = jnp.einsum("blk,kh->blh", h, w2) + b2                         # (B, L, H)
    p = jax.nn.softmax(s, axis=1)                                     # softmax over L
    return jnp.transpose(p, (0, 2, 1))                                # (B, H, L)


if __name__ == "__main__":
    # Small shapes consistent with the module.
    B, L = 2, 8
    input_dim, dense_dim, n_heads = 32, 32, 4

    key = jax.random.PRNGKey(0)
    kx, kw1, kb1, kw2, kb2 = jax.random.split(key, 5)

    x = jax.random.normal(kx, (B, L, input_dim), dtype=jnp.float32)

    # nn.Linear-style init: U(-1/sqrt(fan_in), 1/sqrt(fan_in))
    lim1 = 1.0 / (input_dim ** 0.5)
    w1 = jax.random.uniform(kw1, (input_dim, dense_dim), jnp.float32, -lim1, lim1)
    b1 = jax.random.uniform(kb1, (dense_dim,), jnp.float32, -lim1, lim1)
    lim2 = 1.0 / (dense_dim ** 0.5)
    w2 = jax.random.uniform(kw2, (dense_dim, n_heads), jnp.float32, -lim2, lim2)
    b2 = jax.random.uniform(kb2, (n_heads,), jnp.float32, -lim2, lim2)

    out = attention_forward(x, w1, b1, w2, b2)
    out = jax.block_until_ready(out)

    ref = attention_reference(x, w1, b1, w2, b2)
    assert out.shape == (B, n_heads, L)
    assert jnp.allclose(out, ref, atol=1e-5, rtol=1e-5), "mismatch vs reference"

    print("KERNEL_OK")
</pallas_src>

<mosaic_0001>
module attributes {stable_mosaic.version = 11 : i64} {
  func.func @attention_kernel(%arg0: i32, %arg1: memref<2x8x32xf32, #tpu.memory_space<vmem>>, %arg2: memref<32x32xf32, #tpu.memory_space<vmem>>, %arg3: memref<1x32xf32, #tpu.memory_space<vmem>>, %arg4: memref<32x4xf32, #tpu.memory_space<vmem>>, %arg5: memref<1x4xf32, #tpu.memory_space<vmem>>, %arg6: memref<2x4x8xf32, #tpu.memory_space<vmem>>) attributes {dimension_semantics = [#tpu.dimension_semantics<arbitrary>], iteration_bounds = array<i64: 1>, scalar_prefetch = 0 : i64, scratch_operands = 0 : i64, tpu.core_type = #tpu.core_type<tc>, window_params = [{transform_indices = @transform_0, window_bounds = array<i64: 2, 8, 32>}, {pipeline_mode = #tpu.pipeline_mode<synchronous>, transform_indices = @transform_1, window_bounds = array<i64: 32, 32>}, {pipeline_mode = #tpu.pipeline_mode<synchronous>, transform_indices = @transform_2, window_bounds = array<i64: 1, 32>}, {pipeline_mode = #tpu.pipeline_mode<synchronous>, transform_indices = @transform_3, window_bounds = array<i64: 32, 4>}, {pipeline_mode = #tpu.pipeline_mode<synchronous>, transform_indices = @transform_4, window_bounds = array<i64: 1, 4>}, {transform_indices = @transform_5, window_bounds = array<i64: 2, 4, 8>}]} {
    %c0 = arith.constant 0 : index
    %c0_0 = arith.constant 0 : index
    %c0_1 = arith.constant 0 : index
    %0 = vector.load %arg1[%c0, %c0_0, %c0_1] : memref<2x8x32xf32, #tpu.memory_space<vmem>>, vector<2x8x32xf32>
    %1 = vector.shape_cast %0 : vector<2x8x32xf32> to vector<16x32xf32>
    %c0_2 = arith.constant 0 : index
    %c0_3 = arith.constant 0 : index
    %2 = vector.load %arg2[%c0_2, %c0_3] : memref<32x32xf32, #tpu.memory_space<vmem>>, vector<32x32xf32>
    %cst = arith.constant dense<0.000000e+00> : vector<16x32xf32>
    %3 = tpu.matmul %1, %2, %cst {dimension_numbers = #tpu.dot_dimension_numbers<[1], [0], [0], [1], [0, 0, 1, 1], [], []>} : vector<16x32xf32>, vector<32x32xf32>, vector<16x32xf32> -> vector<16x32xf32>
    %c0_4 = arith.constant 0 : index
    %c0_5 = arith.constant 0 : index
    %4 = vector.load %arg3[%c0_4, %c0_5] : memref<1x32xf32, #tpu.memory_space<vmem>>, vector<1x32xf32>
    %5 = vector.broadcast %4 : vector<1x32xf32> to vector<16x32xf32>
    %6 = arith.addf %3, %5 : vector<16x32xf32>
    %7 = math.tanh %6 : vector<16x32xf32>
    %c0_6 = arith.constant 0 : index
    %c0_7 = arith.constant 0 : index
    %8 = vector.load %arg4[%c0_6, %c0_7] : memref<32x4xf32, #tpu.memory_space<vmem>>, vector<32x4xf32>
    %cst_8 = arith.constant dense<0.000000e+00> : vector<16x4xf32>
    %9 = tpu.matmul %7, %8, %cst_8 {dimension_numbers = #tpu.dot_dimension_numbers<[1], [0], [0], [1], [0, 0, 1, 1], [], []>} : vector<16x32xf32>, vector<32x4xf32>, vector<16x4xf32> -> vector<16x4xf32>
    %c0_9 = arith.constant 0 : index
    %c0_10 = arith.constant 0 : index
    %10 = vector.load %arg5[%c0_9, %c0_10] : memref<1x4xf32, #tpu.memory_space<vmem>>, vector<1x4xf32>
    %11 = vector.broadcast %10 : vector<1x4xf32> to vector<16x4xf32>
    %12 = arith.addf %9, %11 : vector<16x4xf32>
    %13 = vector.shape_cast %12 : vector<16x4xf32> to vector<2x8x4xf32>
    %14 = tpu.transpose %13, [0, 2, 1] : vector<2x8x4xf32> -> vector<2x4x8xf32>
    %cst_11 = arith.constant dense<0xFF800000> : vector<2x4xf32>
    %15 = vector.multi_reduction <maximumf>, %14, %cst_11 [2] : vector<2x4x8xf32> to vector<2x4xf32>
    %16 = vector.shape_cast %15 : vector<2x4xf32> to vector<2x4x1xf32>
    %17 = vector.broadcast %16 : vector<2x4x1xf32> to vector<2x4x8xf32>
    %18 = arith.subf %14, %17 : vector<2x4x8xf32>
    %19 = math.exp %18 : vector<2x4x8xf32>
    %cst_12 = arith.constant dense<0.000000e+00> : vector<2x4xf32>
    %20 = vector.multi_reduction <add>, %19, %cst_12 [2] : vector<2x4x8xf32> to vector<2x4xf32>
    %21 = vector.shape_cast %20 : vector<2x4xf32> to vector<2x4x1xf32>
    %22 = vector.broadcast %21 : vector<2x4x1xf32> to vector<2x4x8xf32>
    %23 = arith.divf %19, %22 : vector<2x4x8xf32>
    %c0_13 = arith.constant 0 : index
    %c0_14 = arith.constant 0 : index
    %c0_15 = arith.constant 0 : index
    %24 = vector.load %arg6[%c0_13, %c0_14, %c0_15] : memref<2x4x8xf32, #tpu.memory_space<vmem>>, vector<2x4x8xf32>
    tpu.vector_store %arg6[%c0_13, %c0_14, %c0_15], %23 {strides = array<i32>} : memref<2x4x8xf32, #tpu.memory_space<vmem>>, vector<2x4x8xf32>,
    return
  }
  func.func @transform_0(%arg0: i32) -> (i32, i32, i32) {
    %c0_i32 = arith.constant 0 : i32
    %c0_i32_0 = arith.constant 0 : i32
    %c0_i32_1 = arith.constant 0 : i32
    return %arg0, %c0_i32, %c0_i32_0 : i32, i32, i32
  }
  func.func @transform_1(%arg0: i32) -> (i32, i32) {
    %c0_i32 = arith.constant 0 : i32
    %c0_i32_0 = arith.constant 0 : i32
    %c0_i32_1 = arith.constant 0 : i32
    return %c0_i32, %c0_i32_0 : i32, i32
  }
  func.func @transform_2(%arg0: i32) -> (i32, i32) {
    %c0_i32 = arith.constant 0 : i32
    %c0_i32_0 = arith.constant 0 : i32
    %c0_i32_1 = arith.constant 0 : i32
    return %c0_i32, %c0_i32_0 : i32, i32
  }
  func.func @transform_3(%arg0: i32) -> (i32, i32) {
    %c0_i32 = arith.constant 0 : i32
    %c0_i32_0 = arith.constant 0 : i32
    %c0_i32_1 = arith.constant 0 : i32
    return %c0_i32, %c0_i32_0 : i32, i32
  }
  func.func @transform_4(%arg0: i32) -> (i32, i32) {
    %c0_i32 = arith.constant 0 : i32
    %c0_i32_0 = arith.constant 0 : i32
    %c0_i32_1 = arith.constant 0 : i32
    return %c0_i32, %c0_i32_0 : i32, i32
  }
  func.func @transform_5(%arg0: i32) -> (i32, i32, i32) {
    %c0_i32 = arith.constant 0 : i32
    %c0_i32_0 = arith.constant 0 : i32
    %c0_i32_1 = arith.constant 0 : i32
    return %arg0, %c0_i32, %c0_i32_0 : i32, i32, i32
  }
}

</mosaic_0001>

<llo_original>
// kernel: tpu_custom_call.1
$region0: #{tpu_custom_call.1}
  #allocation0 [shape = 'u32[]', space=smem, size = 0x4, offset = 0x4, fixed_abs, tag = 'smem constant byte address 0x4 - core index']
  #allocation1 [shape = 'u32[144,128]{1,0:T(1,128)}', space=vmem, size = 0x12000, scoped, tag = 'internal scratch']
  %s0 = inlined_call_operand.hbm [shape: f32[2,8,32], index: 0, kind: input, shape index: {}]
  %s1 = inlined_call_operand.vmem [shape: f32[32,32], index: 1, kind: input, shape index: {}]
  %s2 = inlined_call_operand.vmem [shape: f32[1,32], index: 2, kind: input, shape index: {}]
  %s3 = inlined_call_operand.vmem [shape: f32[32,4], index: 3, kind: input, shape index: {}]
  %s4 = inlined_call_operand.vmem [shape: f32[1,4], index: 4, kind: input, shape index: {}]
  %s5 = inlined_call_operand.hbm [shape: f32[2,4,8], index: 5, kind: output, shape index: {}]
  %s6 = sld [smem:[#allocation0]]
  $region34: #{tpu_custom_call.1} parent=0
    _
  %s8 = ssub.s32 1, %s6
  %s9 = scalar_select 0, %s8, %s6
  $region1: #{tpu_custom_call.1} parent=0
    #allocation2 [shape = 'u8[8192]{0}', space=vmem, size = 0x2000, scoped, tag = 'input window, operand 0, single buffered']
    #allocation3 [shape = 's32[1]{0}', space=sflag, size = 0x4, scoped, tag = 'scoped memory for tpu_custom_call.1']
    #allocation4 [shape = 's32[1]{0}', space=sflag, size = 0x4, scoped, tag = 'scoped memory for tpu_custom_call.1']
    #allocation5 [shape = 'u8[4096]{0}', space=vmem, size = 0x1000, scoped, tag = 'output window, operand 0, single buffered']
    %10 = vsyncpa [#allocation3], 0
    %11 = vsyncpa [#allocation4], 0
    // Predicated region
    $region2: #{tpu_custom_call.1} parent=1 // pred_check
      _
    $region3: #{tpu_custom_call.1} parent=1 // pred_check_branch
      %13 = sbr.rel (0) target = $region5
    $region4: #{tpu_custom_call.1} parent=1 // pred_region
      %s15 = ssub.s32 256, 256
      %16 = vsyncadd [#allocation3], %s15
      %s17 = sshll.u32 [#allocation2], 4
      %s18 = int_to_ptr.vmem [resolvable:$true] %s17
      %23 = dma.hbm_to_vmem [thread:$0]  %s0, 256, %s18, [#allocation3], 128, 128, 8
    $region5: #{tpu_custom_call.1} parent=1 // pred_fallthru
      _
    // Predicated region
    $region6: #{tpu_custom_call.1} parent=1 // pred_check
      _
    $region7: #{tpu_custom_call.1} parent=1 // pred_check_branch
      %25 = sbr.rel (0) target = $region9
    $region8: #{tpu_custom_call.1} parent=1 // pred_region
      _
    $region9: #{tpu_custom_call.1} parent=1 // pred_fallthru
      _
    // Predicated region
    $region10: #{tpu_custom_call.1} parent=1 // pred_check
      _
    $region11: #{tpu_custom_call.1} parent=1 // pred_check_branch
      %27 = sbr.rel (0) target = $region13
    $region12: #{tpu_custom_call.1} parent=1 // pred_region
      _
    $region13: #{tpu_custom_call.1} parent=1 // pred_fallthru
      _
    // Predicated region
    $region14: #{tpu_custom_call.1} parent=1 // pred_check
      _
    $region15: #{tpu_custom_call.1} parent=1 // pred_check_branch
      %29 = sbr.rel (0) target = $region17
    $region16: #{tpu_custom_call.1} parent=1 // pred_region
      _
    $region17: #{tpu_custom_call.1} parent=1 // pred_fallthru
      _
    // Predicated region
    $region18: #{tpu_custom_call.1} parent=1 // pred_check
      _
    $region19: #{tpu_custom_call.1} parent=1 // pred_check_branch
      %31 = sbr.rel (0) target = $region21
    $region20: #{tpu_custom_call.1} parent=1 // pred_region
      _
    $region21: #{tpu_custom_call.1} parent=1 // pred_fallthru
      _
    // Predicated region
    $region22: #{tpu_custom_call.1} parent=1 // pred_check
      _
    $region23: #{tpu_custom_call.1} parent=1 // pred_check_branch
      %33 = sbr.rel (0) target = $region25
    $region24: #{tpu_custom_call.1} parent=1 // pred_region
      %34 = dma.done [#allocation3], 256
    $region25: #{tpu_custom_call.1} parent=1 // pred_fallthru
      _
    %v35 = vld [vmem:[#allocation2] sm:$0xff]
    %v36 = vld [vmem:[#allocation2 + $0x8] sm:$0xff]
    %v37 = vld [vmem:[%s1] sm:$0xff]
    %v38 = vld [vmem:[%s1 + $0x8] sm:$0xff]
    %v39 = vld [vmem:[%s1 + $0x10] sm:$0xff]
    %v40 = vld [vmem:[%s1 + $0x18] sm:$0xff]
    %v41 = vld [vmem:[%s2] sm:$0x1]
    %v43 = vlaneseq
    %v44 = vshrl.u32 %v43, 7
    %v45 = vsub.s32 0, %v44
    %v46 = vrot.slane %v41, %v45
    %vm48 = vcmask 261120
    %v50 = vsel %vm48, %v35, 0
    %v53 = vsel %vm48, %v36, 0
    %55 = vmatprep.subr.mxu0 0.0
    %56 = vmatpush1.msra.mxu0 %v37
    %57 = vmatprep.subr.mxu0 0.0
    %58 = vmatpush1.msra.mxu0 %v38
    %59 = vmatprep.subr.mxu0 0.0
    %60 = vmatpush1.msra.mxu0 %v39
    %61 = vmatprep.subr.mxu0 0.0
    %62 = vmatpush1.msra.mxu0 %v40
    %63 = vmatprep.subr.mxu0 0.0
    %64 = vmatpush1.msra.mxu0 0.0
    %65 = vmatprep.subr.mxu0 0.0
    %66 = vmatpush1.msra.mxu0 0.0
    %67 = vmatprep.subr.mxu0 0.0
    %68 = vmatpush1.msra.mxu0 0.0
    %69 = vmatprep.subr.mxu0 0.0
    %70 = vmatpush1.msra.mxu0 0.0
    %71 = vmatprep.subr.mxu0 0.0
    %72 = vmatpush1.msra.mxu0 0.0
    %73 = vmatprep.subr.mxu0 0.0
    %74 = vmatpush1.msra.mxu0 0.0
    %75 = vmatprep.subr.mxu0 0.0
    %76 = vmatpush1.msra.mxu0 0.0
    %77 = vmatprep.subr.mxu0 0.0
    %78 = vmatpush1.msra.mxu0 0.0
    %79 = vmatprep.subr.mxu0 0.0
    %80 = vmatpush1.msra.mxu0 0.0
    %81 = vmatprep.subr.mxu0 0.0
    %82 = vmatpush1.msra.mxu0 0.0
    %83 = vmatprep.subr.mxu0 0.0
    %84 = vmatpush1.msra.mxu0 0.0
    %85 = vmatprep.subr.mxu0 0.0
    %86 = vmatpush1.msra.mxu0 0.0
    %87 = vmatprep.subr.mxu0 0.0
    %88 = vmatpush1.msra.mxu0 0.0
    %89 = vmatprep.subr.mxu0 0.0
    %90 = vmatpush1.msra.mxu0 0.0
    %91 = vmatprep.subr.mxu0 0.0
    %92 = vmatpush1.msra.mxu0 0.0
    %93 = vmatprep.subr.mxu0 0.0
    %94 = vmatpush1.msra.mxu0 0.0
    %95 = vmatprep.subr.mxu0 0.0
    %96 = vmatpush1.msra.mxu0 0.0
    %97 = vmatprep.subr.mxu0 0.0
    %98 = vmatpush1.msra.mxu0 0.0
    %99 = vmatprep.subr.mxu0 0.0
    %100 = vmatpush1.msra.mxu0 0.0
    %101 = vmatprep.subr.mxu0 0.0
    %102 = vmatpush1.msra.mxu0 0.0
    %103 = vmatprep.subr.mxu0 0.0
    %104 = vmatpush1.msra.mxu0 0.0
    %105 = vmatprep.subr.mxu0 0.0
    %106 = vmatpush1.msra.mxu0 0.0
    %107 = vmatprep.subr.mxu0 0.0
    %108 = vmatpush1.msra.mxu0 0.0
    %109 = vmatprep.subr.mxu0 0.0
    %110 = vmatpush1.msra.mxu0 0.0
    %111 = vmatprep.subr.mxu0 0.0
    %112 = vmatpush1.msra.mxu0 0.0
    %113 = vmatprep.subr.mxu0 0.0
    %114 = vmatpush1.msra.mxu0 0.0
    %115 = vmatprep.subr.mxu0 0.0
    %116 = vmatpush1.msra.mxu0 0.0
    %117 = vmatprep.subr.mxu0 0.0
    %118 = vmatpush1.msra.mxu0 0.0
    %119 = vmatprep.mubr.f32.mxu0 0.0
    %120 = vmatmul.mubr.f32.gmra.mrb[0].mxu0 %v50
    %v121 = vpop.f32.mrb[0].mxu0
    %v122 = vadd.f32 %v46, %v121
    %v123 = vpop.f32.mrb[0].mxu0
    %124 = vmatprep.mubr.f32.mxu0 0.0
    %125 = vmatmul.mubr.f32.gmra.mrb[0].mxu0 %v53
    %v126 = vpop.f32.mrb[0].mxu0
    %v127 = vadd.f32 %v46, %v126
    %v128 = vpop.f32.mrb[0].mxu0
    %129 = vdwg.mxu0
    %v130 = vtanh.pop %v122
    %v131 = vtanh.pop %v127
    %v132 = vld [vmem:[%s3] sm:$0xff]
    %v133 = vld [vmem:[%s3 + $0x8] sm:$0xff]
    %v134 = vld [vmem:[%s3 + $0x10] sm:$0xff]
    %v135 = vld [vmem:[%s3 + $0x18] sm:$0xff]
    %v136 = vld [vmem:[%s4] sm:$0x1]
    %v138 = vlaneseq
    %v139 = vshrl.u32 %v138, 7
    %v140 = vsub.s32 0, %v139
    %v141 = vrot.slane %v136, %v140
    %v144 = vsel %vm48, %v130, 0
    %v147 = vsel %vm48, %v131, 0
    %149 = vmatprep.subr.mxu0 0.0
    %150 = vmatpush1.msra.mxu0 %v132
    %151 = vmatprep.subr.mxu0 0.0
    %152 = vmatpush1.msra.mxu0 %v133
    %153 = vmatprep.subr.mxu0 0.0
    %154 = vmatpush1.msra.mxu0 %v134
    %155 = vmatprep.subr.mxu0 0.0
    %156 = vmatpush1.msra.mxu0 %v135
    %157 = vmatprep.subr.mxu0 0.0
    %158 = vmatpush1.msra.mxu0 0.0
    %159 = vmatprep.subr.mxu0 0.0
    %160 = vmatpush1.msra.mxu0 0.0
    %161 = vmatprep.subr.mxu0 0.0
    %162 = vmatpush1.msra.mxu0 0.0
    %163 = vmatprep.subr.mxu0 0.0
    %164 = vmatpush1.msra.mxu0 0.0
    %165 = vmatprep.subr.mxu0 0.0
    %166 = vmatpush1.msra.mxu0 0.0
    %167 = vmatprep.subr.mxu0 0.0
    %168 = vmatpush1.msra.mxu0 0.0
    %169 = vmatprep.subr.mxu0 0.0
    %170 = vmatpush1.msra.mxu0 0.0
    %171 = vmatprep.subr.mxu0 0.0
    %172 = vmatpush1.msra.mxu0 0.0
    %173 = vmatprep.subr.mxu0 0.0
    %174 = vmatpush1.msra.mxu0 0.0
    %175 = vmatprep.subr.mxu0 0.0
    %176 = vmatpush1.msra.mxu0 0.0
    %177 = vmatprep.subr.mxu0 0.0
    %178 = vmatpush1.msra.mxu0 0.0
    %179 = vmatprep.subr.mxu0 0.0
    %180 = vmatpush1.msra.mxu0 0.0
    %181 = vmatprep.subr.mxu0 0.0
    %182 = vmatpush1.msra.mxu0 0.0
    %183 = vmatprep.subr.mxu0 0.0
    %184 = vmatpush1.msra.mxu0 0.0
    %185 = vmatprep.subr.mxu0 0.0
    %186 = vmatpush1.msra.mxu0 0.0
    %187 = vmatprep.subr.mxu0 0.0
    %188 = vmatpush1.msra.mxu0 0.0
    %189 = vmatprep.subr.mxu0 0.0
    %190 = vmatpush1.msra.mxu0 0.0
    %191 = vmatprep.subr.mxu0 0.0
    %192 = vmatpush1.msra.mxu0 0.0
    %193 = vmatprep.subr.mxu0 0.0
    %194 = vmatpush1.msra.mxu0 0.0
    %195 = vmatprep.subr.mxu0 0.0
    %196 = vmatpush1.msra.mxu0 0.0
    %197 = vmatprep.subr.mxu0 0.0
    %198 = vmatpush1.msra.mxu0 0.0
    %199 = vmatprep.subr.mxu0 0.0
    %200 = vmatpush1.msra.mxu0 0.0
    %201 = vmatprep.subr.mxu0 0.0
    %202 = vmatpush1.msra.mxu0 0.0
    %203 = vmatprep.subr.mxu0 0.0
    %204 = vmatpush1.msra.mxu0 0.0
    %205 = vmatprep.subr.mxu0 0.0
    %206 = vmatpush1.msra.mxu0 0.0
    %207 = vmatprep.subr.mxu0 0.0
    %208 = vmatpush1.msra.mxu0 0.0
    %209 = vmatprep.subr.mxu0 0.0
    %210 = vmatpush1.msra.mxu0 0.0
    %211 = vmatprep.subr.mxu0 0.0
    %212 = vmatpush1.msra.mxu0 0.0
    %213 = vmatprep.mubr.f32.mxu0 0.0
    %214 = vmatmul.mubr.f32.gmra.mrb[0].mxu0 %v144
    %v215 = vpop.f32.mrb[0].mxu0
    %v216 = vadd.f32 %v141, %v215
    %v217 = vpop.f32.mrb[0].mxu0
    %218 = vmatprep.mubr.f32.mxu0 0.0
    %219 = vmatmul.mubr.f32.gmra.mrb[0].mxu0 %v147
    %v220 = vpop.f32.mrb[0].mxu0
    %v221 = vadd.f32 %v141, %v220
    %v222 = vpop.f32.mrb[0].mxu0
    %223 = vdwg.mxu0
    %224 = vxpose.xlu0.b32.start [1/16] %v216, 128
    %225 = vxpose.xlu0.b32.cont [2/16] 0.0, 128
    %226 = vxpose.xlu0.b32.cont [3/16] 0.0, 128
    %227 = vxpose.xlu0.b32.cont [4/16] 0.0, 128
    %228 = vxpose.xlu0.b32.cont [5/16] 0.0, 128
    %229 = vxpose.xlu0.b32.cont [6/16] 0.0, 128
    %230 = vxpose.xlu0.b32.cont [7/16] 0.0, 128
    %231 = vxpose.xlu0.b32.cont [8/16] 0.0, 128
    %232 = vxpose.xlu0.b32.cont [9/16] 0.0, 128
    %233 = vxpose.xlu0.b32.cont [10/16] 0.0, 128
    %234 = vxpose.xlu0.b32.cont [11/16] 0.0, 128
    %235 = vxpose.xlu0.b32.cont [12/16] 0.0, 128
    %236 = vxpose.xlu0.b32.cont [13/16] 0.0, 128
    %237 = vxpose.xlu0.b32.cont [14/16] 0.0, 128
    %238 = vxpose.xlu0.b32.cont [15/16] 0.0, 128
    %239 = vxpose.xlu0.b32.end [16/16] 0.0, 128
    %v240 = vpop.trf.xlu0
    %v241 = vpop.trf.xlu0
    %v242 = vpop.trf.xlu0
    %v243 = vpop.trf.xlu0
    %v244 = vpop.trf.xlu0
    %v245 = vpop.trf.xlu0
    %v246 = vpop.trf.xlu0
    %v247 = vpop.trf.xlu0
    %v248 = vpop.trf.xlu0
    %v249 = vpop.trf.xlu0
    %v250 = vpop.trf.xlu0
    %v251 = vpop.trf.xlu0
    %v252 = vpop.trf.xlu0
    %v253 = vpop.trf.xlu0
    %v254 = vpop.trf.xlu0
    %v255 = vpop.trf.xlu0
    %256 = vxpose.xlu0.b32.start [1/16] %v221, 128
    %257 = vxpose.xlu0.b32.cont [2/16] 0.0, 128
    %258 = vxpose.xlu0.b32.cont [3/16] 0.0, 128
    %259 = vxpose.xlu0.b32.cont [4/16] 0.0, 128
    %260 = vxpose.xlu0.b32.cont [5/16] 0.0, 128
    %261 = vxpose.xlu0.b32.cont [6/16] 0.0, 128
    %262 = vxpose.xlu0.b32.cont [7/16] 0.0, 128
    %263 = vxpose.xlu0.b32.cont [8/16] 0.0, 128
    %264 = vxpose.xlu0.b32.cont [9/16] 0.0, 128
    %265 = vxpose.xlu0.b32.cont [10/16] 0.0, 128
    %266 = vxpose.xlu0.b32.cont [11/16] 0.0, 128
    %267 = vxpose.xlu0.b32.cont [12/16] 0.0, 128
    %268 = vxpose.xlu0.b32.cont [13/16] 0.0, 128
    %269 = vxpose.xlu0.b32.cont [14/16] 0.0, 128
    %270 = vxpose.xlu0.b32.cont [15/16] 0.0, 128
    %271 = vxpose.xlu0.b32.end [16/16] 0.0, 128
    %v272 = vpop.trf.xlu0
    %v273 = vpop.trf.xlu0
    %v274 = vpop.trf.xlu0
    %v275 = vpop.trf.xlu0
    %v276 = vpop.trf.xlu0
    %v277 = vpop.trf.xlu0
    %v278 = vpop.trf.xlu0
    %v279 = vpop.trf.xlu0
    %v280 = vpop.trf.xlu0
    %v281 = vpop.trf.xlu0
    %v282 = vpop.trf.xlu0
    %v283 = vpop.trf.xlu0
    %v284 = vpop.trf.xlu0
    %v285 = vpop.trf.xlu0
    %v286 = vpop.trf.xlu0
    %v287 = vpop.trf.xlu0
    %vm288 = vcmask 60416
    %v289 = vsel %vm288, %v240, -inf
    %290 = vmax.xlane.f32.xlu0 %v289
    %v291 = vpop.xlane.xlu0 %290
    %v292 = vsel %vm288, %v272, -inf
    %293 = vmax.xlane.f32.xlu0 %v292
    %v294 = vpop.xlane.xlu0 %293
    %v295 = vsub.f32 %v240, %v291
    %v296 = vsub.f32 %v272, %v294
    %v297 = vmul.f32 %v295, 1.442695
    %v298 = vpow.pop %v297
    %v299 = vmul.f32 %v296, 1.442695
    %v300 = vpow.pop %v299
    %v301 = vsel %vm288, %v298, 0.0
    %302 = vadd.xlane.f32.xlu0 %v301
    %v303 = vpop.xlane.xlu0 %302
    %v304 = vsel %vm288, %v300, 0.0
    %305 = vadd.xlane.f32.xlu0 %v304
    %v306 = vpop.xlane.xlu0 %305
    %v307 = vrcp.pop %v303
    %v308 = vmul.f32 %v298, %v307
    %v309 = vrcp.pop %v306
    %v310 = vmul.f32 %v300, %v309
    %311 = vst.msk [vmem:[#allocation5] sm:$0xf] %vm288, %v308
    %312 = vst.msk [vmem:[#allocation5 + $0x4] sm:$0xf] %vm288, %v310
    // Predicated region
    $region26: #{tpu_custom_call.1} parent=1 // pred_check
      _
    $region27: #{tpu_custom_call.1} parent=1 // pred_check_branch
      %314 = sbr.rel (0) target = $region29
    $region28: #{tpu_custom_call.1} parent=1 // pred_region
      %s316 = ssub.s32 128, 128
      %317 = vsyncadd [#allocation4], %s316
      %s318 = sshll.u32 [#allocation5], 4
      %s319 = int_to_ptr.vmem [resolvable:$true] %s318
      %324 = dma.vmem_to_hbm [thread:$0]  %s319, 128, %s5, [#allocation4], 64, 64, 4
    $region29: #{tpu_custom_call.1} parent=1 // pred_fallthru
      _
    // Predicated region
    $region30: #{tpu_custom_call.1} parent=1 // pred_check
      _
    $region31: #{tpu_custom_call.1} parent=1 // pred_check_branch
      %326 = sbr.rel (0) target = $region33
    $region32: #{tpu_custom_call.1} parent=1 // pred_region
      %327 = dma.done [#allocation4], 128
    $region33: #{tpu_custom_call.1} parent=1 // pred_fallthru
      _
    %328 = vsyncpa [#allocation3], 1
    %329 = vsyncpa [#allocation4], 1

</llo_original>
